<compile_context>
chip_gen: v7x
topology: tpu7x:2x2x1
jax: 0.10.0
libtpu: 0.0.40
codegen_flags: <defaults>
</compile_context>

<pallas_src>
import functools
import math

import numpy as np

import jax
import jax.numpy as jnp
from jax.experimental import pallas as pl
from jax.experimental.pallas import tpu as pltpu

_LANE = 128
_SUBLANE = 8
_LANES_TARGET = 2048                 # preferred lane width of a lane-dense output tile
_VMEM_BUDGET = 40 * 1024 * 1024      # working-set budget used for tile sizing
_VMEM_LIMIT = 48 * 1024 * 1024       # scoped VMEM limit (safe on v5e/v6e/v7x)


def _round_up(x, m):
    return ((x + m - 1) // m) * m


def _divisor_tile(n, quantum, cap):
    """Largest multiple of `quantum` that divides `n` and is <= cap (clamped).

    Returns None if `quantum` does not divide `n`.
    """
    if n % quantum != 0:
        return None
    cap = max(quantum, min(cap, n))
    t = (cap // quantum) * quantum
    while t >= quantum:
        if n % t == 0:
            return t
        t -= quantum
    return quantum


def _pick_axis_tile(n, quantum, cap):
    """Pick a tile size along an axis of extent `n`.

    Preference order:
      (a) a multiple of `quantum` that divides `n` exactly (no padding, no
          post-kernel slice),
      (b) the whole axis as one full-dim block if it fits under `cap`,
      (c) pad `n` up to a multiple of `quantum` (caller slices the result).
    Returns (tile, padded_n).
    """
    t = _divisor_tile(n, quantum, cap)
    if t is not None:
        return t, n
    if n <= cap:
        return n, n
    n_p = _round_up(n, quantum)
    return _divisor_tile(n_p, quantum, cap), n_p


# ---------------------------------------------------------------------------
# Lane-dense path: output tile is (TM, W) with W = TN*D a multiple of 128 (or
# the full output width).  The test tile is replicated across the TN train
# slots via a one-hot MXU matmul, computed once per test tile (hoisted out of
# the train axis) and cached in a VMEM scratch.
# ---------------------------------------------------------------------------
def _diffs_dense_kernel(lane_mod_ref, test_ref, trainf_ref, out_ref, trep_ref):
    # lane_mod_ref: (1, W) int32 with lane_mod[0, m] = m % D   (constant blocks)
    # test_ref    : (TM, D)  -- depends on grid axis i only
    # trainf_ref  : (1, W)   -- train tile flattened to a single row
    # out_ref     : (TM, W)  -- lane-dense output tile
    # trep_ref    : (TM, W)  -- VMEM scratch: test tile replicated across TN slots
    @pl.when(pl.program_id(1) == 0)
    def _():
        d = test_ref.shape[1]
        w = out_ref.shape[1]
        # One-hot replication matrix rep[k, m] = 1 iff (m % d) == k, built on the
        # VPU from the prefetched lane-index row (no modulo / reshape in-kernel).
        row = jax.lax.broadcasted_iota(jnp.int32, (d, w), 0)
        rep = (lane_mod_ref[...] == row).astype(test_ref.dtype)
        # (test @ rep)[i, m] == test[i, m % d]; exact for one-hot weights at
        # HIGHEST precision (and for bf16 inputs regardless).
        trep_ref[...] = jnp.dot(
            test_ref[...],
            rep,
            preferred_element_type=jnp.float32,
            precision=jax.lax.Precision.HIGHEST,
        ).astype(trep_ref.dtype)

    # Subtraction in the promoted I/O dtype (matches the torch reference and the
    # simple path).  (1, W) row broadcasts over the TM sublanes.
    out_ref[...] = (trep_ref[...] - trainf_ref[...]).astype(out_ref.dtype)


@functools.partial(jax.jit, static_argnames=("tm", "w"))
def _diffs_dense_call(lane_mod, test_x, trainf, *, tm, w):
    n_test_p, d = test_x.shape
    w_full = trainf.shape[1]
    grid = (n_test_p // tm, w_full // w)
    out_dtype = test_x.dtype
    itemsize = np.dtype(out_dtype).itemsize
    return pl.pallas_call(
        _diffs_dense_kernel,
        out_shape=jax.ShapeDtypeStruct((n_test_p, w_full), out_dtype),
        grid_spec=pltpu.PrefetchScalarGridSpec(
            num_scalar_prefetch=0,
            grid=grid,
            in_specs=[
                pl.BlockSpec((1, w), lambda i, j: (0, 0)),    # lane-index row (const)
                pl.BlockSpec((tm, d), lambda i, j: (i, 0)),   # test tile (i only)
                pl.BlockSpec((1, w), lambda i, j: (0, j)),    # flattened train tile
            ],
            out_specs=pl.BlockSpec((tm, w), lambda i, j: (i, j)),
            scratch_shapes=[pltpu.VMEM((tm, w), out_dtype)],  # replicated test tile
        ),
        compiler_params=pltpu.CompilerParams(
            # j must iterate 0..N-1 per i so the hoisted scratch stays valid.
            dimension_semantics=("parallel", "arbitrary"),
            vmem_limit_bytes=_VMEM_LIMIT,
        ),
        cost_estimate=pl.CostEstimate(
            flops=2 * n_test_p * d * w + n_test_p * w_full,
            transcendentals=0,
            bytes_accessed=(n_test_p * w_full + n_test_p * d
                            + (n_test_p // tm) * w_full + w) * itemsize,
        ),
    )(lane_mod, test_x, trainf)


def _dense_tm_cap(w, d, itemsize):
    """Max output-tile rows keeping the dense-path working set inside budget.

    Working set per grid step: out tile x2 (double buffer) + trep scratch
    (I/O dtype) + transient f32 matmul result + transient one-hot matrix +
    double-buffered (1, W) rows + slack.
    """
    fixed = d * w * 4 + 4 * w * (itemsize + 4) + (1 << 20)
    avail = _VMEM_BUDGET - fixed
    if avail <= 0:
        return 0
    return int(avail // (w * (3 * itemsize + 4)))


def _plan_dense(n_test, n_train, d, itemsize):
    """Tile plan for the lane-dense path: (tm, tn, n_test_p, n_train_p) or None."""
    lane_q = _LANE // math.gcd(d, _LANE)          # smallest tn with (tn*d) % 128 == 0
    tn_cap = max(lane_q, _LANES_TARGET // d)
    tn = _divisor_tile(n_train, lane_q, tn_cap)
    n_train_p = n_train
    if tn is None:
        # No exact lane-aligned train tiling: take the whole train set as one
        # full-width block if that still leaves room for a minimal row tile,
        # otherwise pad the train rows (the wrapper slices the result).
        cap_full = _dense_tm_cap(n_train * d, d, itemsize)
        if cap_full >= min(_SUBLANE, n_test):
            tn = n_train
        else:
            n_train_p = _round_up(n_train, lane_q)
            tn = _divisor_tile(n_train_p, lane_q, tn_cap)
    w = tn * d
    tm_cap = _dense_tm_cap(w, d, itemsize)
    if tm_cap < min(_SUBLANE, n_test):
        return None                                # too wide; use the simple path
    tm, n_test_p = _pick_axis_tile(n_test, _SUBLANE, tm_cap)
    return tm, tn, n_test_p, n_train_p


# ---------------------------------------------------------------------------
# Plain 3-D blocked path (D already a multiple of 128 -> naturally lane-dense,
# integer dtypes, or lane-dense tiling does not fit the VMEM budget).
# ---------------------------------------------------------------------------
def _diffs_simple_kernel(test_ref, train_ref, out_ref):
    # test_ref: (TM, D), train_ref: (TN, D), out_ref: (TM, TN, D)
    out_ref[...] = test_ref[...][:, None, :] - train_ref[...][None, :, :]


@functools.partial(jax.jit, static_argnames=("tm", "tn"))
def _diffs_simple_call(test_x, train_x, *, tm, tn):
    n_test_p, d = test_x.shape
    n_train_p = train_x.shape[0]
    grid = (n_test_p // tm, n_train_p // tn)
    out_dtype = test_x.dtype
    itemsize = np.dtype(out_dtype).itemsize
    return pl.pallas_call(
        _diffs_simple_kernel,
        out_shape=jax.ShapeDtypeStruct((n_test_p, n_train_p, d), out_dtype),
        grid_spec=pltpu.PrefetchScalarGridSpec(
            num_scalar_prefetch=0,
            grid=grid,
            in_specs=[
                pl.BlockSpec((tm, d), lambda i, j: (i, 0)),
                pl.BlockSpec((tn, d), lambda i, j: (j, 0)),
            ],
            out_specs=pl.BlockSpec((tm, tn, d), lambda i, j: (i, j, 0)),
        ),
        compiler_params=pltpu.CompilerParams(
            dimension_semantics=("parallel", "parallel"),
            vmem_limit_bytes=_VMEM_LIMIT,
        ),
        cost_estimate=pl.CostEstimate(
            flops=n_test_p * n_train_p * d,
            transcendentals=0,
            bytes_accessed=(n_test_p * n_train_p * d
                            + (n_train_p // tn) * n_test_p * d
                            + (n_test_p // tm) * n_train_p * d) * itemsize,
        ),
    )(test_x, train_x)


def _plan_simple(n_test, n_train, d, itemsize):
    """Tile plan for the 3-D blocked path: (tm, tn, n_test_p, n_train_p)."""
    row_bytes = max(1, d * itemsize)
    # Train-axis tile: sublane dim of both the train block and the 3-D out block.
    tn_cap = max(_SUBLANE, min(1024, _VMEM_BUDGET // (4 * _SUBLANE * row_bytes)))
    tn, n_train_p = _pick_axis_tile(n_train, _SUBLANE, tn_cap)
    # Test-axis tile: sublane dim of the test block / leading dim of the out block.
    tile_bytes = tn * row_bytes
    tm_cap = max(1, (_VMEM_BUDGET - 4 * tile_bytes) // (2 * (tile_bytes + row_bytes)))
    tm, n_test_p = _pick_axis_tile(n_test, _SUBLANE, tm_cap)
    return tm, tn, n_test_p, n_train_p


# ---------------------------------------------------------------------------
# Public wrapper.
# ---------------------------------------------------------------------------
def kernel_diffs(test_Xs, train_Xs):
    """Pairwise (test - train) differences for 2-D (N, D) inputs on TPU."""
    assert test_Xs.ndim == 2 and train_Xs.ndim == 2
    assert test_Xs.shape[1] == train_Xs.shape[1]
    dtype = jnp.promote_types(test_Xs.dtype, train_Xs.dtype)
    test_Xs = test_Xs.astype(dtype)
    train_Xs = train_Xs.astype(dtype)
    n_test, d = test_Xs.shape
    n_train = train_Xs.shape[0]
    if n_test == 0 or n_train == 0 or d == 0:
        return jnp.zeros((n_test, n_train, d), dtype)
    itemsize = np.dtype(dtype).itemsize

    # Lane-dense path: for D that is not a multiple of 128, write a
    # (N_test, N_train*D) slab whose last dim is a multiple of 128 (or the full
    # width) so stores are unmasked full-lane vst; reshape back is layout-free.
    plan = None
    if d % _LANE != 0 and jnp.issubdtype(dtype, jnp.floating):
        plan = _plan_dense(n_test, n_train, d, itemsize)

    if plan is not None:
        tm, tn, n_test_p, n_train_p = plan
        test_p = (test_Xs if n_test_p == n_test
                  else jnp.pad(test_Xs, ((0, n_test_p - n_test), (0, 0))))
        train_p = (train_Xs if n_train_p == n_train
                   else jnp.pad(train_Xs, ((0, n_train_p - n_train), (0, 0))))
        trainf = train_p.reshape(1, n_train_p * d)
        w = tn * d
        lane_mod = (jnp.arange(w, dtype=jnp.int32) % d).reshape(1, w)
        out2d = _diffs_dense_call(lane_mod, test_p, trainf, tm=tm, w=w)
        out = out2d.reshape(n_test_p, n_train_p, d)      # layout-free split reshape
        if n_test_p != n_test or n_train_p != n_train:
            out = out[:n_test, :n_train]                 # last-resort slice only
        return out

    # Plain 3-D blocked path.
    tm, tn, n_test_p, n_train_p = _plan_simple(n_test, n_train, d, itemsize)
    test_p = (test_Xs if n_test_p == n_test
              else jnp.pad(test_Xs, ((0, n_test_p - n_test), (0, 0))))
    train_p = (train_Xs if n_train_p == n_train
               else jnp.pad(train_Xs, ((0, n_train_p - n_train), (0, 0))))
    out = _diffs_simple_call(test_p, train_p, tm=tm, tn=tn)
    if n_test_p != n_test or n_train_p != n_train:
        out = out[:n_test, :n_train]
    return out


class Kernel:
    """JAX/Pallas port of the abstract torch `Kernel` base class."""

    def __init__(self, bandwidth=1.0):
        self.bandwidth = bandwidth

    def _diffs(self, test_Xs, train_Xs):
        """Difference between each x in test_Xs and all train_Xs (Pallas hot path)."""
        assert test_Xs.shape[1:] == train_Xs.shape[1:]
        n_test, n_train = test_Xs.shape[0], train_Xs.shape[0]
        feat_shape = test_Xs.shape[1:]
        diffs = kernel_diffs(
            test_Xs.reshape(n_test, -1), train_Xs.reshape(n_train, -1)
        )
        return diffs.reshape(n_test, n_train, *feat_shape)

    def forward(self, test_Xs, train_Xs):
        # TODO(synk): abstract in the reference module; no semantics to implement.
        raise NotImplementedError

    def sample(self, train_Xs):
        # TODO(synk): abstract in the reference module; no semantics to implement.
        raise NotImplementedError


if __name__ == "__main__":
    key = jax.random.PRNGKey(0)
    k1, k2, k3, k4 = jax.random.split(key, 4)
    kern = Kernel(bandwidth=1.0)

    # 1) small f32, D=32 -> lane-dense path, exact-divisor tiles (no pad/slice).
    t1 = jax.random.normal(k1, (16, 32), dtype=jnp.float32)
    r1 = jax.random.normal(k2, (8, 32), dtype=jnp.float32)
    d1 = jax.block_until_ready(kern._diffs(t1, r1))
    ref1 = t1[:, None, :] - r1[None, :, :]
    assert d1.shape == (16, 8, 32), d1.shape
    assert jnp.allclose(d1, ref1, atol=1e-6), float(jnp.max(jnp.abs(d1 - ref1)))

    # 2) ragged sizes + multi-dim feature shape -> full-dim blocks, no pad/slice.
    t2 = jax.random.normal(k1, (5, 3, 4), dtype=jnp.float32)
    r2 = jax.random.normal(k2, (7, 3, 4), dtype=jnp.float32)
    d2 = jax.block_until_ready(kern._diffs(t2, r2))
    ref2 = t2[:, None] - r2[None, :]
    assert d2.shape == (5, 7, 3, 4), d2.shape
    assert jnp.allclose(d2, ref2, atol=1e-6)

    # 3) multi-step train grid -> exercises the hoisted replication (pl.when(j==0)).
    t3 = jax.random.normal(k3, (48, 24), dtype=jnp.float32)
    r3 = jax.random.normal(k4, (256, 24), dtype=jnp.float32)
    d3 = jax.block_until_ready(kern._diffs(t3, r3))
    ref3 = t3[:, None, :] - r3[None, :, :]
    assert d3.shape == (48, 256, 24), d3.shape
    assert jnp.allclose(d3, ref3, atol=1e-6), float(jnp.max(jnp.abs(d3 - ref3)))

    # 4) D a multiple of 128 -> plain 3-D blocked path (naturally lane-dense).
    t4 = jax.random.normal(k3, (12, 128), dtype=jnp.float32)
    r4 = jax.random.normal(k4, (10, 128), dtype=jnp.float32)
    d4 = jax.block_until_ready(kern._diffs(t4, r4))
    ref4 = t4[:, None, :] - r4[None, :, :]
    assert d4.shape == (12, 10, 128), d4.shape
    assert jnp.allclose(d4, ref4, atol=1e-6)

    # 5) integer dtype -> the MXU replication path is skipped (dtype gate).
    ti = jnp.arange(6 * 16, dtype=jnp.int32).reshape(6, 16)
    ri = (jnp.arange(9 * 16, dtype=jnp.int32) * 3).reshape(9, 16)
    di = jax.block_until_ready(kern._diffs(ti, ri))
    refi = ti[:, None, :] - ri[None, :, :]
    assert di.shape == (6, 9, 16), di.shape
    assert jnp.array_equal(di, refi)

    print("KERNEL_OK")
</pallas_src>

<mosaic_0001>
module attributes {stable_mosaic.version = 11 : i64} {
  func.func @_diffs_dense_kernel(%arg0: i32, %arg1: i32, %arg2: memref<1x256xi32, #tpu.memory_space<vmem>>, %arg3: memref<16x32xf32, #tpu.memory_space<vmem>>, %arg4: memref<1x256xf32, #tpu.memory_space<vmem>>, %arg5: memref<16x256xf32, #tpu.memory_space<vmem>>, %arg6: memref<16x256xf32, #tpu.memory_space<vmem>>) attributes {dimension_semantics = [#tpu.dimension_semantics<parallel>, #tpu.dimension_semantics<arbitrary>], iteration_bounds = array<i64: 1, 1>, scalar_prefetch = 0 : i64, scratch_operands = 1 : i64, tpu.core_type = #tpu.core_type<tc>, window_params = [{pipeline_mode = #tpu.pipeline_mode<synchronous>, transform_indices = @transform_0, window_bounds = array<i64: 1, 256>}, {transform_indices = @transform_1, window_bounds = array<i64: 16, 32>}, {transform_indices = @transform_2, window_bounds = array<i64: 1, 256>}, {transform_indices = @transform_3, window_bounds = array<i64: 16, 256>}]} {
    %c0_i32 = arith.constant 0 : i32
    %0 = arith.cmpi eq, %arg1, %c0_i32 : i32
    %1 = arith.extui %0 : i1 to i32
    %c0_i32_0 = arith.constant 0 : i32
    %2 = arith.cmpi ne, %1, %c0_i32_0 : i32
    scf.if %2 {
      %8 = tpu.iota {dimensions = array<i32: 0>} : vector<32x256xi32>
      %c0_6 = arith.constant 0 : index
      %c0_7 = arith.constant 0 : index
      %9 = vector.load %arg2[%c0_6, %c0_7] : memref<1x256xi32, #tpu.memory_space<vmem>>, vector<1x256xi32>
      %10 = vector.broadcast %9 : vector<1x256xi32> to vector<32x256xi32>
      %11 = arith.cmpi eq, %10, %8 : vector<32x256xi32>
      %12 = arith.extui %11 : vector<32x256xi1> to vector<32x256xi32>
      %13 = arith.sitofp %12 : vector<32x256xi32> to vector<32x256xf32>
      %c0_8 = arith.constant 0 : index
      %c0_9 = arith.constant 0 : index
      %14 = vector.load %arg3[%c0_8, %c0_9] : memref<16x32xf32, #tpu.memory_space<vmem>>, vector<16x32xf32>
      %cst = arith.constant dense<0.000000e+00> : vector<16x256xf32>
      %15 = tpu.matmul %14, %13, %cst {dimension_numbers = #tpu.dot_dimension_numbers<[1], [0], [0], [1], [0, 0, 1, 1], [], []>, precision = #tpu.contract_precision<fp32>} : vector<16x32xf32>, vector<32x256xf32>, vector<16x256xf32> -> vector<16x256xf32>
      %c0_10 = arith.constant 0 : index
      %c0_11 = arith.constant 0 : index
      %16 = vector.load %arg6[%c0_10, %c0_11] : memref<16x256xf32, #tpu.memory_space<vmem>>, vector<16x256xf32>
      tpu.vector_store %arg6[%c0_10, %c0_11], %15 {strides = array<i32>} : memref<16x256xf32, #tpu.memory_space<vmem>>, vector<16x256xf32>,
    } else {
    }
    %c0 = arith.constant 0 : index
    %c0_1 = arith.constant 0 : index
    %3 = vector.load %arg6[%c0, %c0_1] : memref<16x256xf32, #tpu.memory_space<vmem>>, vector<16x256xf32>
    %c0_2 = arith.constant 0 : index
    %c0_3 = arith.constant 0 : index
    %4 = vector.load %arg4[%c0_2, %c0_3] : memref<1x256xf32, #tpu.memory_space<vmem>>, vector<1x256xf32>
    %5 = vector.broadcast %4 : vector<1x256xf32> to vector<16x256xf32>
    %6 = arith.subf %3, %5 : vector<16x256xf32>
    %c0_4 = arith.constant 0 : index
    %c0_5 = arith.constant 0 : index
    %7 = vector.load %arg5[%c0_4, %c0_5] : memref<16x256xf32, #tpu.memory_space<vmem>>, vector<16x256xf32>
    tpu.vector_store %arg5[%c0_4, %c0_5], %6 {strides = array<i32>} : memref<16x256xf32, #tpu.memory_space<vmem>>, vector<16x256xf32>,
    return
  }
  func.func @transform_0(%arg0: i32, %arg1: i32) -> (i32, i32) {
    %c0_i32 = arith.constant 0 : i32
    %c0_i32_0 = arith.constant 0 : i32
    %c0_i32_1 = arith.constant 0 : i32
    return %c0_i32, %c0_i32_0 : i32, i32
  }
  func.func @transform_1(%arg0: i32, %arg1: i32) -> (i32, i32) {
    %c0_i32 = arith.constant 0 : i32
    %c0_i32_0 = arith.constant 0 : i32
    return %arg0, %c0_i32 : i32, i32
  }
  func.func @transform_2(%arg0: i32, %arg1: i32) -> (i32, i32) {
    %c0_i32 = arith.constant 0 : i32
    %c0_i32_0 = arith.constant 0 : i32
    return %c0_i32, %arg1 : i32, i32
  }
  func.func @transform_3(%arg0: i32, %arg1: i32) -> (i32, i32) {
    %c0_i32 = arith.constant 0 : i32
    return %arg0, %arg1 : i32, i32
  }
}

</mosaic_0001>

<llo_original>
// kernel: _diffs_dense_call.1
$region0: #{_diffs_dense_call.1}
  #allocation0 [shape = 'u32[]', space=smem, size = 0x4, offset = 0x4, fixed_abs, tag = 'smem constant byte address 0x4 - core index']
  #allocation1 [shape = 'u32[144,128]{1,0:T(1,128)}', space=vmem, size = 0x12000, scoped, tag = 'internal scratch']
  #allocation2 [shape = 'f32[16,256]{1,0:T(8,128)}', space=vmem, size = 0x4000, scoped, tag = 'scratch operand']
  %s0 = inlined_call_operand.hbm [shape: s32[1,256], index: 0, kind: input, shape index: {}]
  %s1 = inlined_call_operand.hbm [shape: f32[16,32], index: 1, kind: input, shape index: {}]
  %s2 = inlined_call_operand.vmem [shape: f32[1,256], index: 2, kind: input, shape index: {}]
  %s3 = inlined_call_operand.hbm [shape: f32[16,256], index: 3, kind: output, shape index: {}]
  %s4 = sld [smem:[#allocation0]]
  $region34: #{_diffs_dense_call.1} parent=0
    _
  %s6 = ssub.s32 1, %s4
  %s7 = scalar_select 0, %s6, %s4
  $region1: #{_diffs_dense_call.1} parent=0
    #allocation3 [shape = 'u8[1024]{0}', space=vmem, size = 0x400, scoped, tag = 'input window, operand 0, single buffered']
    #allocation4 [shape = 's32[1]{0}', space=sflag, size = 0x4, scoped, tag = 'scoped memory for _diffs_dense_call.1']
    #allocation5 [shape = 's32[1]{0}', space=sflag, size = 0x4, scoped, tag = 'scoped memory for _diffs_dense_call.1']
    #allocation6 [shape = 'u8[8192]{0}', space=vmem, size = 0x2000, scoped, tag = 'input window, operand 1, single buffered']
    #allocation7 [shape = 's32[1]{0}', space=sflag, size = 0x4, scoped, tag = 'scoped memory for _diffs_dense_call.1']
    #allocation8 [shape = 'u8[16384]{0}', space=vmem, size = 0x4000, scoped, tag = 'output window, operand 0, single buffered']
    %8 = vsyncpa [#allocation4], 0
    %9 = vsyncpa [#allocation7], 0
    %10 = vsyncpa [#allocation5], 0
    // Predicated region
    $region2: #{_diffs_dense_call.1} parent=1 // pred_check
      _
    $region3: #{_diffs_dense_call.1} parent=1 // pred_check_branch
      %12 = sbr.rel (0) target = $region5
    $region4: #{_diffs_dense_call.1} parent=1 // pred_region
      %s14 = ssub.s32 32, 32
      %15 = vsyncadd [#allocation4], %s14
      %s17 = sshll.u32 [#allocation3], 4
      %s18 = int_to_ptr.vmem [resolvable:$true] %s17
      %20 = dma.hbm_to_vmem [thread:$0]  %s0, 32, %s18, [#allocation4]
    $region5: #{_diffs_dense_call.1} parent=1 // pred_fallthru
      _
    // Predicated region
    $region6: #{_diffs_dense_call.1} parent=1 // pred_check
      _
    $region7: #{_diffs_dense_call.1} parent=1 // pred_check_branch
      %22 = sbr.rel (0) target = $region9
    $region8: #{_diffs_dense_call.1} parent=1 // pred_region
      %s24 = ssub.s32 256, 256
      %25 = vsyncadd [#allocation7], %s24
      %s26 = sshll.u32 [#allocation6], 4
      %s27 = int_to_ptr.vmem [resolvable:$true] %s26
      %32 = dma.hbm_to_vmem [thread:$0]  %s1, 256, %s27, [#allocation7], 128, 128, 8
    $region9: #{_diffs_dense_call.1} parent=1 // pred_fallthru
      _
    // Predicated region
    $region10: #{_diffs_dense_call.1} parent=1 // pred_check
      _
    $region11: #{_diffs_dense_call.1} parent=1 // pred_check_branch
      %34 = sbr.rel (0) target = $region13
    $region12: #{_diffs_dense_call.1} parent=1 // pred_region
      _
    $region13: #{_diffs_dense_call.1} parent=1 // pred_fallthru
      _
    // Predicated region
    $region14: #{_diffs_dense_call.1} parent=1 // pred_check
      _
    $region15: #{_diffs_dense_call.1} parent=1 // pred_check_branch
      %36 = sbr.rel (0) target = $region17
    $region16: #{_diffs_dense_call.1} parent=1 // pred_region
      %37 = dma.done [#allocation4], 32
    $region17: #{_diffs_dense_call.1} parent=1 // pred_fallthru
      _
    // Predicated region
    $region18: #{_diffs_dense_call.1} parent=1 // pred_check
      _
    $region19: #{_diffs_dense_call.1} parent=1 // pred_check_branch
      %39 = sbr.rel (0) target = $region21
    $region20: #{_diffs_dense_call.1} parent=1 // pred_region
      %40 = dma.done [#allocation7], 256
    $region21: #{_diffs_dense_call.1} parent=1 // pred_fallthru
      _
    %p41 = scmp.eq.s32.totalorder 0, 0
    // Predicated region
    $region22: #{_diffs_dense_call.1} parent=1 // pred_check
      %p42 = pneg %p41
    $region23: #{_diffs_dense_call.1} parent=1 // pred_check_branch
      %44 = sbr.rel (%p42) target = $region25
    $region24: #{_diffs_dense_call.1} parent=1 // pred_region
      %v45 = vlaneseq
      %v46 = vshrl.u32 %v45, 7
      %v47 = vadd.s32 %v46, 8
      %v48 = vadd.s32 %v46, 16
      %v49 = vadd.s32 %v46, 24
      %v50 = vld [vmem:[#allocation3] sm:$0x3]
      %v51 = vlaneseq
      %v52 = vshrl.u32 %v51, 7
      %v53 = vsub.s32 0, %v52
      %v54 = vrot.slane %v50, %v53
      %v55 = vlaneseq
      %v56 = vshrl.u32 %v55, 7
      %v57 = vsub.s32 1, %v56
      %v58 = vrot.slane %v50, %v57
      %vm59 = vcmp.eq.s32.totalorder %v54, %v46
      %vm60 = vcmp.eq.s32.totalorder %v58, %v46
      %vm61 = vcmp.eq.s32.totalorder %v54, %v47
      %vm62 = vcmp.eq.s32.totalorder %v58, %v47
      %vm63 = vcmp.eq.s32.totalorder %v54, %v48
      %vm64 = vcmp.eq.s32.totalorder %v58, %v48
      %vm65 = vcmp.eq.s32.totalorder %v54, %v49
      %vm66 = vcmp.eq.s32.totalorder %v58, %v49
      %v67 = vsel %vm59, 1, 0
      %v68 = vsel %vm60, 1, 0
      %v69 = vsel %vm61, 1, 0
      %v70 = vsel %vm62, 1, 0
      %v71 = vsel %vm63, 1, 0
      %v72 = vsel %vm64, 1, 0
      %v73 = vsel %vm65, 1, 0
      %v74 = vsel %vm66, 1, 0
      %v75 = vcvt.s32.f32 %v67
      %v76 = vcvt.s32.f32 %v68
      %v77 = vcvt.s32.f32 %v69
      %v78 = vcvt.s32.f32 %v70
      %v79 = vcvt.s32.f32 %v71
      %v80 = vcvt.s32.f32 %v72
      %v81 = vcvt.s32.f32 %v73
      %v82 = vcvt.s32.f32 %v74
      %v83 = vld [vmem:[#allocation6] sm:$0xff]
      %v84 = vld [vmem:[#allocation6 + $0x8] sm:$0xff]
      %vm85 = vcmask 261120
      %v87 = vsel %vm85, %v83, 0
      %v90 = vsel %vm85, %v84, 0
      %v92 = vand.u32 %v76, 4294901760
      %93 = vmatprep.subr.mxu0 %v92
      %v94 = vand.u32 %v75, 4294901760
      %95 = vmatpush1.msra.mxu0 %v94
      %v96 = vand.u32 %v78, 4294901760
      %97 = vmatprep.subr.mxu0 %v96
      %v98 = vand.u32 %v77, 4294901760
      %99 = vmatpush1.msra.mxu0 %v98
      %v100 = vand.u32 %v80, 4294901760
      %101 = vmatprep.subr.mxu0 %v100
      %v102 = vand.u32 %v79, 4294901760
      %103 = vmatpush1.msra.mxu0 %v102
      %v104 = vand.u32 %v82, 4294901760
      %105 = vmatprep.subr.mxu0 %v104
      %v106 = vand.u32 %v81, 4294901760
      %107 = vmatpush1.msra.mxu0 %v106
      %108 = vmatprep.subr.mxu0 0.0
      %109 = vmatpush1.msra.mxu0 0.0
      %110 = vmatprep.subr.mxu0 0.0
      %111 = vmatpush1.msra.mxu0 0.0
      %112 = vmatprep.subr.mxu0 0.0
      %113 = vmatpush1.msra.mxu0 0.0
      %114 = vmatprep.subr.mxu0 0.0
      %115 = vmatpush1.msra.mxu0 0.0
      %116 = vmatprep.subr.mxu0 0.0
      %117 = vmatpush1.msra.mxu0 0.0
      %118 = vmatprep.subr.mxu0 0.0
      %119 = vmatpush1.msra.mxu0 0.0
      %120 = vmatprep.subr.mxu0 0.0
      %121 = vmatpush1.msra.mxu0 0.0
      %122 = vmatprep.subr.mxu0 0.0
      %123 = vmatpush1.msra.mxu0 0.0
      %124 = vmatprep.subr.mxu0 0.0
      %125 = vmatpush1.msra.mxu0 0.0
      %126 = vmatprep.subr.mxu0 0.0
      %127 = vmatpush1.msra.mxu0 0.0
      %128 = vmatprep.subr.mxu0 0.0
      %129 = vmatpush1.msra.mxu0 0.0
      %130 = vmatprep.subr.mxu0 0.0
      %131 = vmatpush1.msra.mxu0 0.0
      %132 = vmatprep.subr.mxu0 0.0
      %133 = vmatpush1.msra.mxu0 0.0
      %134 = vmatprep.subr.mxu0 0.0
      %135 = vmatpush1.msra.mxu0 0.0
      %136 = vmatprep.subr.mxu0 0.0
      %137 = vmatpush1.msra.mxu0 0.0
      %138 = vmatprep.subr.mxu0 0.0
      %139 = vmatpush1.msra.mxu0 0.0
      %140 = vmatprep.subr.mxu0 0.0
      %141 = vmatpush1.msra.mxu0 0.0
      %142 = vmatprep.subr.mxu0 0.0
      %143 = vmatpush1.msra.mxu0 0.0
      %144 = vmatprep.subr.mxu0 0.0
      %145 = vmatpush1.msra.mxu0 0.0
      %146 = vmatprep.subr.mxu0 0.0
      %147 = vmatpush1.msra.mxu0 0.0
      %148 = vmatprep.subr.mxu0 0.0
      %149 = vmatpush1.msra.mxu0 0.0
      %150 = vmatprep.subr.mxu0 0.0
      %151 = vmatpush1.msra.mxu0 0.0
      %152 = vmatprep.subr.mxu0 0.0
      %153 = vmatpush1.msra.mxu0 0.0
      %154 = vmatprep.subr.mxu0 0.0
      %155 = vmatpush1.msra.mxu0 0.0
      %156 = vmatprep.subr.mxu0 0.0
      %157 = vmatpush1.msra.mxu0 0.0
      %158 = vmatprep.subr.mxu0 0.0
      %159 = vmatpush1.msra.mxu0 0.0
      %160 = vmatprep.subr.mxu0 0.0
      %161 = vmatpush1.msra.mxu0 0.0
      %162 = vmatprep.subr.mxu0 0.0
      %163 = vmatpush1.msra.mxu0 0.0
      %164 = vmatprep.mubr.f32.mxu0 0.0
      %v165 = vand.u32 %v87, 4294901760
      %v166 = vsub.f32 %v87, %v165
      %v167 = vand.u32 %v166, 4294901760
      %v168 = vsub.f32 %v166, %v167
      %v169 = vand.u32 %v168, 4294901760
      %170 = vmatmul.mubr.f32.gmra.mrb[0].mxu0 %v169
      %v171 = vpop.f32.mrb[0].mxu0
      %v172 = vadd.f32 0.0, %v171
      %v173 = vpop.f32.mrb[0].mxu0
      %v174 = vadd.f32 0.0, %v173
      %175 = vmatprep.mubr.f32.mxu0 0.0
      %v176 = vand.u32 %v90, 4294901760
      %v177 = vsub.f32 %v90, %v176
      %v178 = vand.u32 %v177, 4294901760
      %v179 = vsub.f32 %v177, %v178
      %v180 = vand.u32 %v179, 4294901760
      %181 = vmatmul.mubr.f32.gmra.mrb[0].mxu0 %v180
      %v182 = vpop.f32.mrb[0].mxu0
      %v183 = vadd.f32 0.0, %v182
      %v184 = vpop.f32.mrb[0].mxu0
      %v185 = vadd.f32 0.0, %v184
      %186 = vdwg.mxu0
      %v187 = vand.u32 %v76, 4294901760
      %v188 = vsub.f32 %v76, %v187
      %v189 = vand.u32 %v188, 4294901760
      %v190 = vsub.f32 %v188, %v189
      %v191 = vand.u32 %v190, 4294901760
      %192 = vmatprep.subr.mxu0 %v191
      %v193 = vand.u32 %v75, 4294901760
      %v194 = vsub.f32 %v75, %v193
      %v195 = vand.u32 %v194, 4294901760
      %v196 = vsub.f32 %v194, %v195
      %v197 = vand.u32 %v196, 4294901760
      %198 = vmatpush1.msra.mxu0 %v197
      %v199 = vand.u32 %v78, 4294901760
      %v200 = vsub.f32 %v78, %v199
      %v201 = vand.u32 %v200, 4294901760
      %v202 = vsub.f32 %v200, %v201
      %v203 = vand.u32 %v202, 4294901760
      %204 = vmatprep.subr.mxu0 %v203
      %v205 = vand.u32 %v77, 4294901760
      %v206 = vsub.f32 %v77, %v205
      %v207 = vand.u32 %v206, 4294901760
      %v208 = vsub.f32 %v206, %v207
      %v209 = vand.u32 %v208, 4294901760
      %210 = vmatpush1.msra.mxu0 %v209
      %v211 = vand.u32 %v80, 4294901760
      %v212 = vsub.f32 %v80, %v211
      %v213 = vand.u32 %v212, 4294901760
      %v214 = vsub.f32 %v212, %v213
      %v215 = vand.u32 %v214, 4294901760
      %216 = vmatprep.subr.mxu0 %v215
      %v217 = vand.u32 %v79, 4294901760
      %v218 = vsub.f32 %v79, %v217
      %v219 = vand.u32 %v218, 4294901760
      %v220 = vsub.f32 %v218, %v219
      %v221 = vand.u32 %v220, 4294901760
      %222 = vmatpush1.msra.mxu0 %v221
      %v223 = vand.u32 %v82, 4294901760
      %v224 = vsub.f32 %v82, %v223
      %v225 = vand.u32 %v224, 4294901760
      %v226 = vsub.f32 %v224, %v225
      %v227 = vand.u32 %v226, 4294901760
      %228 = vmatprep.subr.mxu0 %v227
      %v229 = vand.u32 %v81, 4294901760
      %v230 = vsub.f32 %v81, %v229
      %v231 = vand.u32 %v230, 4294901760
      %v232 = vsub.f32 %v230, %v231
      %v233 = vand.u32 %v232, 4294901760
      %234 = vmatpush1.msra.mxu0 %v233
      %235 = vmatprep.subr.mxu0 0.0
      %236 = vmatpush1.msra.mxu0 0.0
      %237 = vmatprep.subr.mxu0 0.0
      %238 = vmatpush1.msra.mxu0 0.0
      %239 = vmatprep.subr.mxu0 0.0
      %240 = vmatpush1.msra.mxu0 0.0
      %241 = vmatprep.subr.mxu0 0.0
      %242 = vmatpush1.msra.mxu0 0.0
      %243 = vmatprep.subr.mxu0 0.0
      %244 = vmatpush1.msra.mxu0 0.0
      %245 = vmatprep.subr.mxu0 0.0
      %246 = vmatpush1.msra.mxu0 0.0
      %247 = vmatprep.subr.mxu0 0.0
      %248 = vmatpush1.msra.mxu0 0.0
      %249 = vmatprep.subr.mxu0 0.0
      %250 = vmatpush1.msra.mxu0 0.0
      %251 = vmatprep.subr.mxu0 0.0
      %252 = vmatpush1.msra.mxu0 0.0
      %253 = vmatprep.subr.mxu0 0.0
      %254 = vmatpush1.msra.mxu0 0.0
      %255 = vmatprep.subr.mxu0 0.0
      %256 = vmatpush1.msra.mxu0 0.0
      %257 = vmatprep.subr.mxu0 0.0
      %258 = vmatpush1.msra.mxu0 0.0
      %259 = vmatprep.subr.mxu0 0.0
      %260 = vmatpush1.msra.mxu0 0.0
      %261 = vmatprep.subr.mxu0 0.0
      %262 = vmatpush1.msra.mxu0 0.0
      %263 = vmatprep.subr.mxu0 0.0
      %264 = vmatpush1.msra.mxu0 0.0
      %265 = vmatprep.subr.mxu0 0.0
      %266 = vmatpush1.msra.mxu0 0.0
      %267 = vmatprep.subr.mxu0 0.0
      %268 = vmatpush1.msra.mxu0 0.0
      %269 = vmatprep.subr.mxu0 0.0
      %270 = vmatpush1.msra.mxu0 0.0
      %271 = vmatprep.subr.mxu0 0.0
      %272 = vmatpush1.msra.mxu0 0.0
      %273 = vmatprep.subr.mxu0 0.0
      %274 = vmatpush1.msra.mxu0 0.0
      %275 = vmatprep.subr.mxu0 0.0
      %276 = vmatpush1.msra.mxu0 0.0
      %277 = vmatprep.subr.mxu0 0.0
      %278 = vmatpush1.msra.mxu0 0.0
      %279 = vmatprep.subr.mxu0 0.0
      %280 = vmatpush1.msra.mxu0 0.0
      %281 = vmatprep.subr.mxu0 0.0
      %282 = vmatpush1.msra.mxu0 0.0
      %283 = vmatprep.subr.mxu0 0.0
      %284 = vmatpush1.msra.mxu0 0.0
      %285 = vmatprep.subr.mxu0 0.0
      %286 = vmatpush1.msra.mxu0 0.0
      %287 = vmatprep.subr.mxu0 0.0
      %288 = vmatpush1.msra.mxu0 0.0
      %289 = vmatprep.subr.mxu0 0.0
      %290 = vmatpush1.msra.mxu0 0.0
      %291 = vmatprep.mubr.f32.mxu0 0.0
      %v292 = vand.u32 %v87, 4294901760
      %293 = vmatmul.mubr.f32.gmra.mrb[0].mxu0 %v292
      %v294 = vpop.f32.mrb[0].mxu0
      %v295 = vadd.f32 %v172, %v294
      %v296 = vpop.f32.mrb[0].mxu0
      %v297 = vadd.f32 %v174, %v296
      %298 = vmatprep.mubr.f32.mxu0 0.0
      %v299 = vand.u32 %v90, 4294901760
      %300 = vmatmul.mubr.f32.gmra.mrb[0].mxu0 %v299
      %v301 = vpop.f32.mrb[0].mxu0
      %v302 = vadd.f32 %v183, %v301
      %v303 = vpop.f32.mrb[0].mxu0
      %v304 = vadd.f32 %v185, %v303
      %305 = vdwg.mxu0
      %v306 = vand.u32 %v76, 4294901760
      %v307 = vsub.f32 %v76, %v306
      %308 = vmatprep.subr.mxu0 %v307
      %v309 = vand.u32 %v75, 4294901760
      %v310 = vsub.f32 %v75, %v309
      %311 = vmatpush1.msra.mxu0 %v310
      %v312 = vand.u32 %v78, 4294901760
      %v313 = vsub.f32 %v78, %v312
      %314 = vmatprep.subr.mxu0 %v313
      %v315 = vand.u32 %v77, 4294901760
      %v316 = vsub.f32 %v77, %v315
      %317 = vmatpush1.msra.mxu0 %v316
      %v318 = vand.u32 %v80, 4294901760
      %v319 = vsub.f32 %v80, %v318
      %320 = vmatprep.subr.mxu0 %v319
      %v321 = vand.u32 %v79, 4294901760
      %v322 = vsub.f32 %v79, %v321
      %323 = vmatpush1.msra.mxu0 %v322
      %v324 = vand.u32 %v82, 4294901760
      %v325 = vsub.f32 %v82, %v324
      %326 = vmatprep.subr.mxu0 %v325
      %v327 = vand.u32 %v81, 4294901760
      %v328 = vsub.f32 %v81, %v327
      %329 = vmatpush1.msra.mxu0 %v328
      %330 = vmatprep.subr.mxu0 0.0
      %331 = vmatpush1.msra.mxu0 0.0
      %332 = vmatprep.subr.mxu0 0.0
      %333 = vmatpush1.msra.mxu0 0.0
      %334 = vmatprep.subr.mxu0 0.0
      %335 = vmatpush1.msra.mxu0 0.0
      %336 = vmatprep.subr.mxu0 0.0
      %337 = vmatpush1.msra.mxu0 0.0
      %338 = vmatprep.subr.mxu0 0.0
      %339 = vmatpush1.msra.mxu0 0.0
      %340 = vmatprep.subr.mxu0 0.0
      %341 = vmatpush1.msra.mxu0 0.0
      %342 = vmatprep.subr.mxu0 0.0
      %343 = vmatpush1.msra.mxu0 0.0
      %344 = vmatprep.subr.mxu0 0.0
      %345 = vmatpush1.msra.mxu0 0.0
      %346 = vmatprep.subr.mxu0 0.0
      %347 = vmatpush1.msra.mxu0 0.0
      %348 = vmatprep.subr.mxu0 0.0
      %349 = vmatpush1.msra.mxu0 0.0
      %350 = vmatprep.subr.mxu0 0.0
      %351 = vmatpush1.msra.mxu0 0.0
      %352 = vmatprep.subr.mxu0 0.0
      %353 = vmatpush1.msra.mxu0 0.0
      %354 = vmatprep.subr.mxu0 0.0
      %355 = vmatpush1.msra.mxu0 0.0
      %356 = vmatprep.subr.mxu0 0.0
      %357 = vmatpush1.msra.mxu0 0.0
      %358 = vmatprep.subr.mxu0 0.0
      %359 = vmatpush1.msra.mxu0 0.0
      %360 = vmatprep.subr.mxu0 0.0
      %361 = vmatpush1.msra.mxu0 0.0
      %362 = vmatprep.subr.mxu0 0.0
      %363 = vmatpush1.msra.mxu0 0.0
      %364 = vmatprep.subr.mxu0 0.0
      %365 = vmatpush1.msra.mxu0 0.0
      %366 = vmatprep.subr.mxu0 0.0
      %367 = vmatpush1.msra.mxu0 0.0
      %368 = vmatprep.subr.mxu0 0.0
      %369 = vmatpush1.msra.mxu0 0.0
      %370 = vmatprep.subr.mxu0 0.0
      %371 = vmatpush1.msra.mxu0 0.0
      %372 = vmatprep.subr.mxu0 0.0
      %373 = vmatpush1.msra.mxu0 0.0
      %374 = vmatprep.subr.mxu0 0.0
      %375 = vmatpush1.msra.mxu0 0.0
      %376 = vmatprep.subr.mxu0 0.0
      %377 = vmatpush1.msra.mxu0 0.0
      %378 = vmatprep.subr.mxu0 0.0
      %379 = vmatpush1.msra.mxu0 0.0
      %380 = vmatprep.subr.mxu0 0.0
      %381 = vmatpush1.msra.mxu0 0.0
      %382 = vmatprep.subr.mxu0 0.0
      %383 = vmatpush1.msra.mxu0 0.0
      %384 = vmatprep.subr.mxu0 0.0
      %385 = vmatpush1.msra.mxu0 0.0
      %386 = vmatprep.mubr.f32.mxu0 0.0
      %v387 = vand.u32 %v87, 4294901760
      %v388 = vsub.f32 %v87, %v387
      %389 = vmatmul.mubr.f32.gmra.mrb[0].mxu0 %v388
      %v390 = vpop.f32.mrb[0].mxu0
      %v391 = vadd.f32 %v295, %v390
      %v392 = vpop.f32.mrb[0].mxu0
      %v393 = vadd.f32 %v297, %v392
      %394 = vmatprep.mubr.f32.mxu0 0.0
      %v395 = vand.u32 %v90, 4294901760
      %v396 = vsub.f32 %v90, %v395
      %397 = vmatmul.mubr.f32.gmra.mrb[0].mxu0 %v396
      %v398 = vpop.f32.mrb[0].mxu0
      %v399 = vadd.f32 %v302, %v398
      %v400 = vpop.f32.mrb[0].mxu0
      %v401 = vadd.f32 %v304, %v400
      %402 = vdwg.mxu0
      %v403 = vand.u32 %v76, 4294901760
      %404 = vmatprep.subr.mxu0 %v403
      %v405 = vand.u32 %v75, 4294901760
      %406 = vmatpush1.msra.mxu0 %v405
      %v407 = vand.u32 %v78, 4294901760
      %408 = vmatprep.subr.mxu0 %v407
      %v409 = vand.u32 %v77, 4294901760
      %410 = vmatpush1.msra.mxu0 %v409
      %v411 = vand.u32 %v80, 4294901760
      %412 = vmatprep.subr.mxu0 %v411
      %v413 = vand.u32 %v79, 4294901760
      %414 = vmatpush1.msra.mxu0 %v413
      %v415 = vand.u32 %v82, 4294901760
      %416 = vmatprep.subr.mxu0 %v415
      %v417 = vand.u32 %v81, 4294901760
      %418 = vmatpush1.msra.mxu0 %v417
      %419 = vmatprep.subr.mxu0 0.0
      %420 = vmatpush1.msra.mxu0 0.0
      %421 = vmatprep.subr.mxu0 0.0
      %422 = vmatpush1.msra.mxu0 0.0
      %423 = vmatprep.subr.mxu0 0.0
      %424 = vmatpush1.msra.mxu0 0.0
      %425 = vmatprep.subr.mxu0 0.0
      %426 = vmatpush1.msra.mxu0 0.0
      %427 = vmatprep.subr.mxu0 0.0
      %428 = vmatpush1.msra.mxu0 0.0
      %429 = vmatprep.subr.mxu0 0.0
      %430 = vmatpush1.msra.mxu0 0.0
      %431 = vmatprep.subr.mxu0 0.0
      %432 = vmatpush1.msra.mxu0 0.0
      %433 = vmatprep.subr.mxu0 0.0
      %434 = vmatpush1.msra.mxu0 0.0
      %435 = vmatprep.subr.mxu0 0.0
      %436 = vmatpush1.msra.mxu0 0.0
      %437 = vmatprep.subr.mxu0 0.0
      %438 = vmatpush1.msra.mxu0 0.0
      %439 = vmatprep.subr.mxu0 0.0
      %440 = vmatpush1.msra.mxu0 0.0
      %441 = vmatprep.subr.mxu0 0.0
      %442 = vmatpush1.msra.mxu0 0.0
      %443 = vmatprep.subr.mxu0 0.0
      %444 = vmatpush1.msra.mxu0 0.0
      %445 = vmatprep.subr.mxu0 0.0
      %446 = vmatpush1.msra.mxu0 0.0
      %447 = vmatprep.subr.mxu0 0.0
      %448 = vmatpush1.msra.mxu0 0.0
      %449 = vmatprep.subr.mxu0 0.0
      %450 = vmatpush1.msra.mxu0 0.0
      %451 = vmatprep.subr.mxu0 0.0
      %452 = vmatpush1.msra.mxu0 0.0
      %453 = vmatprep.subr.mxu0 0.0
      %454 = vmatpush1.msra.mxu0 0.0
      %455 = vmatprep.subr.mxu0 0.0
      %456 = vmatpush1.msra.mxu0 0.0
      %457 = vmatprep.subr.mxu0 0.0
      %458 = vmatpush1.msra.mxu0 0.0
      %459 = vmatprep.subr.mxu0 0.0
      %460 = vmatpush1.msra.mxu0 0.0
      %461 = vmatprep.subr.mxu0 0.0
      %462 = vmatpush1.msra.mxu0 0.0
      %463 = vmatprep.subr.mxu0 0.0
      %464 = vmatpush1.msra.mxu0 0.0
      %465 = vmatprep.subr.mxu0 0.0
      %466 = vmatpush1.msra.mxu0 0.0
      %467 = vmatprep.subr.mxu0 0.0
      %468 = vmatpush1.msra.mxu0 0.0
      %469 = vmatprep.subr.mxu0 0.0
      %470 = vmatpush1.msra.mxu0 0.0
      %471 = vmatprep.subr.mxu0 0.0
      %472 = vmatpush1.msra.mxu0 0.0
      %473 = vmatprep.subr.mxu0 0.0
      %474 = vmatpush1.msra.mxu0 0.0
      %475 = vmatprep.mubr.f32.mxu0 0.0
      %v476 = vand.u32 %v87, 4294901760
      %v477 = vsub.f32 %v87, %v476
      %v478 = vand.u32 %v477, 4294901760
      %479 = vmatmul.mubr.f32.gmra.mrb[0].mxu0 %v478
      %v480 = vpop.f32.mrb[0].mxu0
      %v481 = vadd.f32 %v391, %v480
      %v482 = vpop.f32.mrb[0].mxu0
      %v483 = vadd.f32 %v393, %v482
      %484 = vmatprep.mubr.f32.mxu0 0.0
      %v485 = vand.u32 %v90, 4294901760
      %v486 = vsub.f32 %v90, %v485
      %v487 = vand.u32 %v486, 4294901760
      %488 = vmatmul.mubr.f32.gmra.mrb[0].mxu0 %v487
      %v489 = vpop.f32.mrb[0].mxu0
      %v490 = vadd.f32 %v399, %v489
      %v491 = vpop.f32.mrb[0].mxu0
      %v492 = vadd.f32 %v401, %v491
      %493 = vdwg.mxu0
      %v494 = vand.u32 %v76, 4294901760
      %v495 = vsub.f32 %v76, %v494
      %v496 = vand.u32 %v495, 4294901760
      %497 = vmatprep.subr.mxu0 %v496
      %v498 = vand.u32 %v75, 4294901760
      %v499 = vsub.f32 %v75, %v498
      %v500 = vand.u32 %v499, 4294901760
      %501 = vmatpush1.msra.mxu0 %v500
      %v502 = vand.u32 %v78, 4294901760
      %v503 = vsub.f32 %v78, %v502
      %v504 = vand.u32 %v503, 4294901760
      %505 = vmatprep.subr.mxu0 %v504
      %v506 = vand.u32 %v77, 4294901760
      %v507 = vsub.f32 %v77, %v506
      %v508 = vand.u32 %v507, 4294901760
      %509 = vmatpush1.msra.mxu0 %v508
      %v510 = vand.u32 %v80, 4294901760
      %v511 = vsub.f32 %v80, %v510
      %v512 = vand.u32 %v511, 4294901760
      %513 = vmatprep.subr.mxu0 %v512
      %v514 = vand.u32 %v79, 4294901760
      %v515 = vsub.f32 %v79, %v514
      %v516 = vand.u32 %v515, 4294901760
      %517 = vmatpush1.msra.mxu0 %v516
      %v518 = vand.u32 %v82, 4294901760
      %v519 = vsub.f32 %v82, %v518
      %v520 = vand.u32 %v519, 4294901760
      %521 = vmatprep.subr.mxu0 %v520
      %v522 = vand.u32 %v81, 4294901760
      %v523 = vsub.f32 %v81, %v522
      %v524 = vand.u32 %v523, 4294901760
      %525 = vmatpush1.msra.mxu0 %v524
      %526 = vmatprep.subr.mxu0 0.0
      %527 = vmatpush1.msra.mxu0 0.0
      %528 = vmatprep.subr.mxu0 0.0
      %529 = vmatpush1.msra.mxu0 0.0
      %530 = vmatprep.subr.mxu0 0.0
      %531 = vmatpush1.msra.mxu0 0.0
      %532 = vmatprep.subr.mxu0 0.0
      %533 = vmatpush1.msra.mxu0 0.0
      %534 = vmatprep.subr.mxu0 0.0
      %535 = vmatpush1.msra.mxu0 0.0
      %536 = vmatprep.subr.mxu0 0.0
      %537 = vmatpush1.msra.mxu0 0.0
      %538 = vmatprep.subr.mxu0 0.0
      %539 = vmatpush1.msra.mxu0 0.0
      %540 = vmatprep.subr.mxu0 0.0
      %541 = vmatpush1.msra.mxu0 0.0
      %542 = vmatprep.subr.mxu0 0.0
      %543 = vmatpush1.msra.mxu0 0.0
      %544 = vmatprep.subr.mxu0 0.0
      %545 = vmatpush1.msra.mxu0 0.0
      %546 = vmatprep.subr.mxu0 0.0
      %547 = vmatpush1.msra.mxu0 0.0
      %548 = vmatprep.subr.mxu0 0.0
      %549 = vmatpush1.msra.mxu0 0.0
      %550 = vmatprep.subr.mxu0 0.0
      %551 = vmatpush1.msra.mxu0 0.0
      %552 = vmatprep.subr.mxu0 0.0
      %553 = vmatpush1.msra.mxu0 0.0
      %554 = vmatprep.subr.mxu0 0.0
      %555 = vmatpush1.msra.mxu0 0.0
      %556 = vmatprep.subr.mxu0 0.0
      %557 = vmatpush1.msra.mxu0 0.0
      %558 = vmatprep.subr.mxu0 0.0
      %559 = vmatpush1.msra.mxu0 0.0
      %560 = vmatprep.subr.mxu0 0.0
      %561 = vmatpush1.msra.mxu0 0.0
      %562 = vmatprep.subr.mxu0 0.0
      %563 = vmatpush1.msra.mxu0 0.0
      %564 = vmatprep.subr.mxu0 0.0
      %565 = vmatpush1.msra.mxu0 0.0
      %566 = vmatprep.subr.mxu0 0.0
      %567 = vmatpush1.msra.mxu0 0.0
      %568 = vmatprep.subr.mxu0 0.0
      %569 = vmatpush1.msra.mxu0 0.0
      %570 = vmatprep.subr.mxu0 0.0
      %571 = vmatpush1.msra.mxu0 0.0
      %572 = vmatprep.subr.mxu0 0.0
      %573 = vmatpush1.msra.mxu0 0.0
      %574 = vmatprep.subr.mxu0 0.0
      %575 = vmatpush1.msra.mxu0 0.0
      %576 = vmatprep.subr.mxu0 0.0
      %577 = vmatpush1.msra.mxu0 0.0
      %578 = vmatprep.subr.mxu0 0.0
      %579 = vmatpush1.msra.mxu0 0.0
      %580 = vmatprep.subr.mxu0 0.0
      %581 = vmatpush1.msra.mxu0 0.0
      %582 = vmatprep.mubr.f32.mxu0 0.0
      %v583 = vand.u32 %v87, 4294901760
      %584 = vmatmul.mubr.f32.gmra.mrb[0].mxu0 %v583
      %v585 = vpop.f32.mrb[0].mxu0
      %v586 = vadd.f32 %v481, %v585
      %v587 = vpop.f32.mrb[0].mxu0
      %v588 = vadd.f32 %v483, %v587
      %589 = vmatprep.mubr.f32.mxu0 0.0
      %v590 = vand.u32 %v90, 4294901760
      %591 = vmatmul.mubr.f32.gmra.mrb[0].mxu0 %v590
      %v592 = vpop.f32.mrb[0].mxu0
      %v593 = vadd.f32 %v490, %v592
      %v594 = vpop.f32.mrb[0].mxu0
      %v595 = vadd.f32 %v492, %v594
      %596 = vdwg.mxu0
      %v597 = vand.u32 %v76, 4294901760
      %598 = vmatprep.subr.mxu0 %v597
      %v599 = vand.u32 %v75, 4294901760
      %600 = vmatpush1.msra.mxu0 %v599
      %v601 = vand.u32 %v78, 4294901760
      %602 = vmatprep.subr.mxu0 %v601
      %v603 = vand.u32 %v77, 4294901760
      %604 = vmatpush1.msra.mxu0 %v603
      %v605 = vand.u32 %v80, 4294901760
      %606 = vmatprep.subr.mxu0 %v605
      %v607 = vand.u32 %v79, 4294901760
      %608 = vmatpush1.msra.mxu0 %v607
      %v609 = vand.u32 %v82, 4294901760
      %610 = vmatprep.subr.mxu0 %v609
      %v611 = vand.u32 %v81, 4294901760
      %612 = vmatpush1.msra.mxu0 %v611
      %613 = vmatprep.subr.mxu0 0.0
      %614 = vmatpush1.msra.mxu0 0.0
      %615 = vmatprep.subr.mxu0 0.0
      %616 = vmatpush1.msra.mxu0 0.0
      %617 = vmatprep.subr.mxu0 0.0
      %618 = vmatpush1.msra.mxu0 0.0
      %619 = vmatprep.subr.mxu0 0.0
      %620 = vmatpush1.msra.mxu0 0.0
      %621 = vmatprep.subr.mxu0 0.0
      %622 = vmatpush1.msra.mxu0 0.0
      %623 = vmatprep.subr.mxu0 0.0
      %624 = vmatpush1.msra.mxu0 0.0
      %625 = vmatprep.subr.mxu0 0.0
      %626 = vmatpush1.msra.mxu0 0.0
      %627 = vmatprep.subr.mxu0 0.0
      %628 = vmatpush1.msra.mxu0 0.0
      %629 = vmatprep.subr.mxu0 0.0
      %630 = vmatpush1.msra.mxu0 0.0
      %631 = vmatprep.subr.mxu0 0.0
      %632 = vmatpush1.msra.mxu0 0.0
      %633 = vmatprep.subr.mxu0 0.0
      %634 = vmatpush1.msra.mxu0 0.0
      %635 = vmatprep.subr.mxu0 0.0
      %636 = vmatpush1.msra.mxu0 0.0
      %637 = vmatprep.subr.mxu0 0.0
      %638 = vmatpush1.msra.mxu0 0.0
      %639 = vmatprep.subr.mxu0 0.0
      %640 = vmatpush1.msra.mxu0 0.0
      %641 = vmatprep.subr.mxu0 0.0
      %642 = vmatpush1.msra.mxu0 0.0
      %643 = vmatprep.subr.mxu0 0.0
      %644 = vmatpush1.msra.mxu0 0.0
      %645 = vmatprep.subr.mxu0 0.0
      %646 = vmatpush1.msra.mxu0 0.0
      %647 = vmatprep.subr.mxu0 0.0
      %648 = vmatpush1.msra.mxu0 0.0
      %649 = vmatprep.subr.mxu0 0.0
      %650 = vmatpush1.msra.mxu0 0.0
      %651 = vmatprep.subr.mxu0 0.0
      %652 = vmatpush1.msra.mxu0 0.0
      %653 = vmatprep.subr.mxu0 0.0
      %654 = vmatpush1.msra.mxu0 0.0
      %655 = vmatprep.subr.mxu0 0.0
      %656 = vmatpush1.msra.mxu0 0.0
      %657 = vmatprep.subr.mxu0 0.0
      %658 = vmatpush1.msra.mxu0 0.0
      %659 = vmatprep.subr.mxu0 0.0
      %660 = vmatpush1.msra.mxu0 0.0
      %661 = vmatprep.subr.mxu0 0.0
      %662 = vmatpush1.msra.mxu0 0.0
      %663 = vmatprep.subr.mxu0 0.0
      %664 = vmatpush1.msra.mxu0 0.0
      %665 = vmatprep.subr.mxu0 0.0
      %666 = vmatpush1.msra.mxu0 0.0
      %667 = vmatprep.subr.mxu0 0.0
      %668 = vmatpush1.msra.mxu0 0.0
      %669 = vmatprep.mubr.f32.mxu0 0.0
      %v670 = vand.u32 %v87, 4294901760
      %671 = vmatmul.mubr.f32.gmra.mrb[0].mxu0 %v670
      %v672 = vpop.f32.mrb[0].mxu0
      %v673 = vadd.f32 %v586, %v672
      %v674 = vpop.f32.mrb[0].mxu0
      %v675 = vadd.f32 %v588, %v674
      %676 = vmatprep.mubr.f32.mxu0 0.0
      %v677 = vand.u32 %v90, 4294901760
      %678 = vmatmul.mubr.f32.gmra.mrb[0].mxu0 %v677
      %v679 = vpop.f32.mrb[0].mxu0
      %v680 = vadd.f32 %v593, %v679
      %v681 = vpop.f32.mrb[0].mxu0
      %v682 = vadd.f32 %v595, %v681
      %683 = vdwg.mxu0
      %684 = vst [vmem:[#allocation2] sm:$0xff] %v673
      %685 = vst [vmem:[#allocation2 + $0x8] sm:$0xff] %v675
      %686 = vst [vmem:[#allocation2 + $0x10] sm:$0xff] %v680
      %687 = vst [vmem:[#allocation2 + $0x18] sm:$0xff] %v682
    $region25: #{_diffs_dense_call.1} parent=1 // pred_fallthru
      _
    %v688 = vld [vmem:[#allocation2] sm:$0xff]
    %v689 = vld [vmem:[#allocation2 + $0x8] sm:$0xff]
    %v690 = vld [vmem:[#allocation2 + $0x10] sm:$0xff]
    %v691 = vld [vmem:[#allocation2 + $0x18] sm:$0xff]
    %v692 = vld [vmem:[%s2] sm:$0x3]
    %v694 = vlaneseq
    %v695 = vshrl.u32 %v694, 7
    %v696 = vsub.s32 0, %v695
    %v697 = vrot.slane %v692, %v696
    %v698 = vlaneseq
    %v699 = vshrl.u32 %v698, 7
    %v700 = vsub.s32 1, %v699
    %v701 = vrot.slane %v692, %v700
    %v704 = vsub.f32 %v688, %v697
    %v705 = vsub.f32 %v689, %v701
    %v706 = vsub.f32 %v690, %v697
    %v707 = vsub.f32 %v691, %v701
    %708 = vst [vmem:[#allocation8] sm:$0xff] %v704
    %709 = vst [vmem:[#allocation8 + $0x8] sm:$0xff] %v705
    %710 = vst [vmem:[#allocation8 + $0x10] sm:$0xff] %v706
    %711 = vst [vmem:[#allocation8 + $0x18] sm:$0xff] %v707
    // Predicated region
    $region26: #{_diffs_dense_call.1} parent=1 // pred_check
      _
    $region27: #{_diffs_dense_call.1} parent=1 // pred_check_branch
      %713 = sbr.rel (0) target = $region29
    $region28: #{_diffs_dense_call.1} parent=1 // pred_region
      %s715 = ssub.s32 512, 512
      %716 = vsyncadd [#allocation5], %s715
      %s717 = sshll.u32 [#allocation8], 4
      %s718 = int_to_ptr.vmem [resolvable:$true] %s717
      %723 = dma.vmem_to_hbm [thread:$0]  %s718, 512, %s3, [#allocation5], 256, 256, 16
    $region29: #{_diffs_dense_call.1} parent=1 // pred_fallthru
      _
    // Predicated region
    $region30: #{_diffs_dense_call.1} parent=1 // pred_check
      _
    $region31: #{_diffs_dense_call.1} parent=1 // pred_check_branch
      %725 = sbr.rel (0) target = $region33
    $region32: #{_diffs_dense_call.1} parent=1 // pred_region
      %726 = dma.done [#allocation5], 512
    $region33: #{_diffs_dense_call.1} parent=1 // pred_fallthru
      _
    %727 = vsyncpa [#allocation4], 1
    %728 = vsyncpa [#allocation7], 1
    %729 = vsyncpa [#allocation5], 1

</llo_original>
